<compile_context>
chip_gen: v7x
topology: tpu7x:2x2x1
jax: 0.10.0
libtpu: 0.0.40
codegen_flags: <defaults>
</compile_context>

<pallas_src>
import jax
import jax.numpy as jnp
from jax.experimental import pallas as pl
from jax.experimental.pallas import tpu as pltpu

DIM = 5
N_K = 1


# ---------------------------------------------------------------------------
# Fused kernel: expand -> residual block -> fused (pose|attn) heads
# All operands are full-extent VMEM blocks; one grid step does everything.
# ---------------------------------------------------------------------------
def _pose_kernel(x_ref, we_ref, wm_ref, wh_ref, ws_ref, sb_ref, o_ref):
    H = we_ref.shape[1]          # h_channels
    H2 = wh_ref.shape[1]         # 2 * h_channels (fused head conv width)
    CO = ws_ref.shape[1]         # DIM*DIM + channels//N_K (fused shrink width)

    def mm(a, w):
        return jnp.dot(a, w, preferred_element_type=jnp.float32)

    x = x_ref[...]                                                   # (B*T*N, Cin)
    # expand (BN scale already folded into the weight; shift + ReLU here)
    h = jnp.maximum(mm(x, we_ref[...]) + sb_ref[0:1, :H], 0.0)
    res = h
    # residual block (two conv+bn+relu, skip added AFTER the ReLU, as in torch)
    h = jnp.maximum(mm(h, wm_ref[0]) + sb_ref[1:2, :H], 0.0)
    h = jnp.maximum(mm(h, wm_ref[1]) + sb_ref[2:3, :H], 0.0)
    h = res + h
    # fused head first-stage conv:  columns [:H] -> pose branch, [H:] -> attn branch
    hh = jnp.maximum(mm(h, wh_ref[...]) + sb_ref[3:4, :H2], 0.0)
    # fused block-diagonal shrink:  columns [:25] -> p1, [25:] -> att
    o_ref[...] = mm(hh, ws_ref[...]) + sb_ref[4:5, :CO]


# ---------------------------------------------------------------------------
# One-time parameter prep: fold BN, transpose weights (channels -> lanes),
# fuse the two heads, pack every shift/bias vector into a single operand.
# ---------------------------------------------------------------------------
def prepare_params(params):
    def fold_t(lyr):
        w = lyr["w"] * lyr["scale"]              # (cout, cin) * (cout, 1)
        return w.T.astype(jnp.float32), lyr["shift"].reshape(-1)

    we, sh_e = fold_t(params["expand"])          # (cin, h)
    w1, sh_1 = fold_t(params["conv1"])           # (h, h)
    w2, sh_2 = fold_t(params["conv2"])           # (h, h)
    wp, sh_p = fold_t(params["p_conv1"])         # (h, h)
    wa, sh_a = fold_t(params["a_conv1"])         # (h, h)

    h = we.shape[1]
    c_p = params["p_shrink"]["w"].shape[0]       # DIM*DIM
    c_a = params["a_shrink"]["w"].shape[0]       # channels // N_K

    w_mid = jnp.stack([w1, w2], axis=0)                          # (2, h, h)
    w_head = jnp.concatenate([wp, wa], axis=1)                   # (h, 2h)
    sh_head = jnp.concatenate([sh_p, sh_a])                      # (2h,)

    # block-diagonal fused shrink weight: [Wps^T  0 ; 0  Was^T]
    w_shrink = jnp.zeros((2 * h, c_p + c_a), jnp.float32)
    w_shrink = w_shrink.at[:h, :c_p].set(params["p_shrink"]["w"].T)
    w_shrink = w_shrink.at[h:, c_p:].set(params["a_shrink"]["w"].T)
    b_shrink = jnp.concatenate([params["p_shrink"]["bias"].reshape(-1),
                                params["a_shrink"]["bias"].reshape(-1)])

    wide = max(c_p + c_a, 2 * h)
    pad = lambda v: jnp.pad(v, (0, wide - v.shape[0]))
    shifts = jnp.stack([pad(sh_e), pad(sh_1), pad(sh_2),
                        pad(sh_head), pad(b_shrink)], axis=0)    # (5, wide)

    return {"w_expand": we, "w_mid": w_mid, "w_head": w_head,
            "w_shrink": w_shrink, "shifts": shifts}


def _const_spec(a):
    n = a.ndim
    return pl.BlockSpec(a.shape, lambda i: (0,) * n)


def pose_forward(prepared, x):
    """x: (B, C1, C2, T, N) float32 -> (p1, att) matching torch Pose.forward (eval)."""
    B, c1, c2, T, N = x.shape
    cin = c1 * c2
    tn = T * N
    rows = B * tn

    we = prepared["w_expand"]
    wm = prepared["w_mid"]
    wh = prepared["w_head"]
    ws = prepared["w_shrink"]
    sb = prepared["shifts"]

    h = we.shape[1]
    c_tot = ws.shape[1]
    c_p = DIM * DIM
    c_a = c_tot - c_p

    # torch x.view(B, -1, T, N) == row-major reshape; tiny wrapper transpose puts
    # channels on the lane axis (layout plumbing only, ~800 floats).
    x_rows = x.reshape(B, cin, tn).transpose(0, 2, 1).reshape(rows, cin)

    flops = 2 * rows * (cin * h + 2 * h * h + h * wh.shape[1] + ws.shape[0] * c_tot)
    bytes_accessed = 4 * (x_rows.size + we.size + wm.size + wh.size + ws.size
                          + sb.size + rows * c_tot)

    out = pl.pallas_call(
        _pose_kernel,
        out_shape=jax.ShapeDtypeStruct((rows, c_tot), jnp.float32),
        grid=(1,),
        in_specs=[_const_spec(x_rows), _const_spec(we), _const_spec(wm),
                  _const_spec(wh), _const_spec(ws), _const_spec(sb)],
        out_specs=pl.BlockSpec((rows, c_tot), lambda i: (0, 0)),
        compiler_params=pltpu.CompilerParams(dimension_semantics=("arbitrary",)),
        cost_estimate=pl.CostEstimate(flops=flops, transcendentals=0,
                                      bytes_accessed=bytes_accessed),
    )(x_rows, we, wm, wh, ws, sb)

    out = out.reshape(B, tn, c_tot)
    p_mat = out[:, :, :c_p].transpose(0, 2, 1)          # (B, DIM*DIM, T*N)
    a_mat = out[:, :, c_p:].transpose(0, 2, 1)          # (B, c_a, T*N)
    p1 = p_mat.reshape(B, DIM, DIM, 1, tn)              # torch: view(B, DIM, DIM, 1, -1)
    att = a_mat.reshape(B, (c_a * T) // DIM, DIM, 1, N) # torch: view(B, -1, DIM, 1, N)
    return p1, att


# ---------------------------------------------------------------------------
# Pure-JAX reference (same eval-mode math, raw params) for validation
# ---------------------------------------------------------------------------
def pose_forward_ref(params, x):
    B, c1, c2, T, N = x.shape
    xf = x.reshape(B, c1 * c2, T, N)

    def conv_bn_relu(lyr, y):
        z = jnp.einsum("oc,bctn->botn", lyr["w"], y)
        z = z * lyr["scale"].reshape(1, -1, 1, 1) + lyr["shift"].reshape(1, -1, 1, 1)
        return jnp.maximum(z, 0.0)

    h = conv_bn_relu(params["expand"], xf)
    res = h
    h = conv_bn_relu(params["conv1"], h)
    h = conv_bn_relu(params["conv2"], h)
    h = res + h
    hp = conv_bn_relu(params["p_conv1"], h)
    p = (jnp.einsum("oc,bctn->botn", params["p_shrink"]["w"], hp)
         + params["p_shrink"]["bias"].reshape(1, -1, 1, 1))
    ha = conv_bn_relu(params["a_conv1"], h)
    a = (jnp.einsum("oc,bctn->botn", params["a_shrink"]["w"], ha)
         + params["a_shrink"]["bias"].reshape(1, -1, 1, 1))
    c_a = params["a_shrink"]["w"].shape[0]
    p1 = p.reshape(B, DIM, DIM, 1, T * N)
    att = a.reshape(B, (c_a * T) // DIM, DIM, 1, N)
    return p1, att


# ---------------------------------------------------------------------------
# Parameter init (BatchNorm expressed as per-channel scale/shift, eval mode)
# ---------------------------------------------------------------------------
def init_conv_bn(key, cout, cin):
    kw, kg, kb, km, kv = jax.random.split(key, 5)
    w = 0.2 * jax.random.normal(kw, (cout, cin), jnp.float32)
    gamma = 1.0 + 0.1 * jax.random.normal(kg, (cout,), jnp.float32)
    beta = 0.1 * jax.random.normal(kb, (cout,), jnp.float32)
    mean = 0.1 * jax.random.normal(km, (cout,), jnp.float32)
    var = 0.5 + jax.random.uniform(kv, (cout,), jnp.float32)
    scale = gamma / jnp.sqrt(var + 1e-5)
    shift = beta - mean * scale
    return {"w": w, "scale": scale.reshape(cout, 1), "shift": shift.reshape(cout, 1)}


def init_conv_bias(key, cout, cin):
    kw, kb = jax.random.split(key)
    w = 0.2 * jax.random.normal(kw, (cout, cin), jnp.float32)
    b = 0.1 * jax.random.normal(kb, (cout,), jnp.float32)
    return {"w": w, "bias": b.reshape(cout, 1)}


def init_params(key, in_channels, channels):
    h = channels // 2
    k = jax.random.split(key, 7)
    return {
        "expand": init_conv_bn(k[0], h, in_channels),
        "conv1": init_conv_bn(k[1], h, h),
        "conv2": init_conv_bn(k[2], h, h),
        "p_conv1": init_conv_bn(k[3], h, h),
        "p_shrink": init_conv_bias(k[4], DIM * DIM, h),
        "a_conv1": init_conv_bn(k[5], h, h),
        "a_shrink": init_conv_bias(k[6], channels // N_K, h),
    }


if __name__ == "__main__":
    key = jax.random.PRNGKey(0)
    kp, kx = jax.random.split(key)

    B, T, N = 2, 1, 5
    channels = 40
    cn = channels // DIM                       # 8
    # In the parent model Pose receives x of shape (B, 2*cn, DIM, T, N) -> in_channels = 2*cn*DIM
    x = jax.random.normal(kx, (B, 2 * cn, DIM, T, N), jnp.float32)
    in_channels = 2 * cn * DIM                 # 80
    params = init_params(kp, in_channels, channels)

    prepared = prepare_params(params)          # one-time prep: BN fold / transpose / pack

    p1, att = jax.jit(pose_forward)(prepared, x)
    p1, att = jax.block_until_ready((p1, att))

    assert p1.shape == (B, DIM, DIM, 1, T * N), p1.shape
    assert att.shape == (B, (channels // N_K) * T // DIM, DIM, 1, N), att.shape
    assert bool(jnp.all(jnp.isfinite(p1))) and bool(jnp.all(jnp.isfinite(att)))

    p1_ref, att_ref = pose_forward_ref(params, x)
    assert bool(jnp.allclose(p1, p1_ref, rtol=1e-3, atol=1e-3))
    assert bool(jnp.allclose(att, att_ref, rtol=1e-3, atol=1e-3))

    print("KERNEL_OK")
</pallas_src>

<mosaic_0001>
module attributes {stable_mosaic.version = 11 : i64} {
  func.func @_pose_kernel(%arg0: i32, %arg1: memref<10x80xf32, #tpu.memory_space<vmem>>, %arg2: memref<80x20xf32, #tpu.memory_space<vmem>>, %arg3: memref<2x20x20xf32, #tpu.memory_space<vmem>>, %arg4: memref<20x40xf32, #tpu.memory_space<vmem>>, %arg5: memref<40x65xf32, #tpu.memory_space<vmem>>, %arg6: memref<5x65xf32, #tpu.memory_space<vmem>>, %arg7: memref<10x65xf32, #tpu.memory_space<vmem>>) attributes {dimension_semantics = [#tpu.dimension_semantics<arbitrary>], iteration_bounds = array<i64: 1>, scalar_prefetch = 0 : i64, scratch_operands = 0 : i64, tpu.core_type = #tpu.core_type<tc>, window_params = [{pipeline_mode = #tpu.pipeline_mode<synchronous>, transform_indices = @transform_0, window_bounds = array<i64: 10, 80>}, {pipeline_mode = #tpu.pipeline_mode<synchronous>, transform_indices = @transform_1, window_bounds = array<i64: 80, 20>}, {pipeline_mode = #tpu.pipeline_mode<synchronous>, transform_indices = @transform_2, window_bounds = array<i64: 2, 20, 20>}, {pipeline_mode = #tpu.pipeline_mode<synchronous>, transform_indices = @transform_3, window_bounds = array<i64: 20, 40>}, {pipeline_mode = #tpu.pipeline_mode<synchronous>, transform_indices = @transform_4, window_bounds = array<i64: 40, 65>}, {pipeline_mode = #tpu.pipeline_mode<synchronous>, transform_indices = @transform_5, window_bounds = array<i64: 5, 65>}, {pipeline_mode = #tpu.pipeline_mode<synchronous>, transform_indices = @transform_6, window_bounds = array<i64: 10, 65>}]} {
    %c0 = arith.constant 0 : index
    %c0_0 = arith.constant 0 : index
    %0 = vector.load %arg1[%c0, %c0_0] : memref<10x80xf32, #tpu.memory_space<vmem>>, vector<10x80xf32>
    %c0_1 = arith.constant 0 : index
    %c0_2 = arith.constant 0 : index
    %1 = vector.load %arg2[%c0_1, %c0_2] : memref<80x20xf32, #tpu.memory_space<vmem>>, vector<80x20xf32>
    %cst = arith.constant dense<0.000000e+00> : vector<10x20xf32>
    %2 = tpu.matmul %0, %1, %cst {dimension_numbers = #tpu.dot_dimension_numbers<[1], [0], [0], [1], [0, 0, 1, 1], [], []>} : vector<10x80xf32>, vector<80x20xf32>, vector<10x20xf32> -> vector<10x20xf32>
    %c0_3 = arith.constant 0 : index
    %c0_4 = arith.constant 0 : index
    %3 = vector.load %arg6[%c0_3, %c0_4] : memref<5x65xf32, #tpu.memory_space<vmem>>, vector<1x20xf32>
    %4 = vector.broadcast %3 : vector<1x20xf32> to vector<10x20xf32>
    %5 = arith.addf %2, %4 : vector<10x20xf32>
    %cst_5 = arith.constant 0.000000e+00 : f32
    %6 = vector.broadcast %cst_5 : f32 to vector<10x20xf32>
    %7 = arith.maximumf %5, %6 : vector<10x20xf32>
    %c0_6 = arith.constant 0 : index
    %c0_7 = arith.constant 0 : index
    %c0_8 = arith.constant 0 : index
    %8 = vector.load %arg3[%c0_6, %c0_7, %c0_8] : memref<2x20x20xf32, #tpu.memory_space<vmem>>, vector<1x20x20xf32>
    %9 = vector.shape_cast %8 : vector<1x20x20xf32> to vector<20x20xf32>
    %cst_9 = arith.constant dense<0.000000e+00> : vector<10x20xf32>
    %10 = tpu.matmul %7, %9, %cst_9 {dimension_numbers = #tpu.dot_dimension_numbers<[1], [0], [0], [1], [0, 0, 1, 1], [], []>} : vector<10x20xf32>, vector<20x20xf32>, vector<10x20xf32> -> vector<10x20xf32>
    %c1 = arith.constant 1 : index
    %c0_10 = arith.constant 0 : index
    %11 = vector.load %arg6[%c1, %c0_10] : memref<5x65xf32, #tpu.memory_space<vmem>>, vector<1x20xf32>
    %12 = vector.broadcast %11 : vector<1x20xf32> to vector<10x20xf32>
    %13 = arith.addf %10, %12 : vector<10x20xf32>
    %cst_11 = arith.constant 0.000000e+00 : f32
    %14 = vector.broadcast %cst_11 : f32 to vector<10x20xf32>
    %15 = arith.maximumf %13, %14 : vector<10x20xf32>
    %c1_12 = arith.constant 1 : index
    %c0_13 = arith.constant 0 : index
    %c0_14 = arith.constant 0 : index
    %16 = vector.load %arg3[%c1_12, %c0_13, %c0_14] : memref<2x20x20xf32, #tpu.memory_space<vmem>>, vector<1x20x20xf32>
    %17 = vector.shape_cast %16 : vector<1x20x20xf32> to vector<20x20xf32>
    %cst_15 = arith.constant dense<0.000000e+00> : vector<10x20xf32>
    %18 = tpu.matmul %15, %17, %cst_15 {dimension_numbers = #tpu.dot_dimension_numbers<[1], [0], [0], [1], [0, 0, 1, 1], [], []>} : vector<10x20xf32>, vector<20x20xf32>, vector<10x20xf32> -> vector<10x20xf32>
    %c2 = arith.constant 2 : index
    %c0_16 = arith.constant 0 : index
    %19 = vector.load %arg6[%c2, %c0_16] : memref<5x65xf32, #tpu.memory_space<vmem>>, vector<1x20xf32>
    %20 = vector.broadcast %19 : vector<1x20xf32> to vector<10x20xf32>
    %21 = arith.addf %18, %20 : vector<10x20xf32>
    %cst_17 = arith.constant 0.000000e+00 : f32
    %22 = vector.broadcast %cst_17 : f32 to vector<10x20xf32>
    %23 = arith.maximumf %21, %22 : vector<10x20xf32>
    %24 = arith.addf %7, %23 : vector<10x20xf32>
    %c0_18 = arith.constant 0 : index
    %c0_19 = arith.constant 0 : index
    %25 = vector.load %arg4[%c0_18, %c0_19] : memref<20x40xf32, #tpu.memory_space<vmem>>, vector<20x40xf32>
    %cst_20 = arith.constant dense<0.000000e+00> : vector<10x40xf32>
    %26 = tpu.matmul %24, %25, %cst_20 {dimension_numbers = #tpu.dot_dimension_numbers<[1], [0], [0], [1], [0, 0, 1, 1], [], []>} : vector<10x20xf32>, vector<20x40xf32>, vector<10x40xf32> -> vector<10x40xf32>
    %c3 = arith.constant 3 : index
    %c0_21 = arith.constant 0 : index
    %27 = vector.load %arg6[%c3, %c0_21] : memref<5x65xf32, #tpu.memory_space<vmem>>, vector<1x40xf32>
    %28 = vector.broadcast %27 : vector<1x40xf32> to vector<10x40xf32>
    %29 = arith.addf %26, %28 : vector<10x40xf32>
    %cst_22 = arith.constant 0.000000e+00 : f32
    %30 = vector.broadcast %cst_22 : f32 to vector<10x40xf32>
    %31 = arith.maximumf %29, %30 : vector<10x40xf32>
    %c0_23 = arith.constant 0 : index
    %c0_24 = arith.constant 0 : index
    %32 = vector.load %arg5[%c0_23, %c0_24] : memref<40x65xf32, #tpu.memory_space<vmem>>, vector<40x65xf32>
    %cst_25 = arith.constant dense<0.000000e+00> : vector<10x65xf32>
    %33 = tpu.matmul %31, %32, %cst_25 {dimension_numbers = #tpu.dot_dimension_numbers<[1], [0], [0], [1], [0, 0, 1, 1], [], []>} : vector<10x40xf32>, vector<40x65xf32>, vector<10x65xf32> -> vector<10x65xf32>
    %c4 = arith.constant 4 : index
    %c0_26 = arith.constant 0 : index
    %34 = vector.load %arg6[%c4, %c0_26] : memref<5x65xf32, #tpu.memory_space<vmem>>, vector<1x65xf32>
    %35 = vector.broadcast %34 : vector<1x65xf32> to vector<10x65xf32>
    %36 = arith.addf %33, %35 : vector<10x65xf32>
    %c0_27 = arith.constant 0 : index
    %c0_28 = arith.constant 0 : index
    %37 = vector.load %arg7[%c0_27, %c0_28] : memref<10x65xf32, #tpu.memory_space<vmem>>, vector<10x65xf32>
    tpu.vector_store %arg7[%c0_27, %c0_28], %36 {strides = array<i32>} : memref<10x65xf32, #tpu.memory_space<vmem>>, vector<10x65xf32>,
    return
  }
  func.func @transform_0(%arg0: i32) -> (i32, i32) {
    %c0_i32 = arith.constant 0 : i32
    %c0_i32_0 = arith.constant 0 : i32
    %c0_i32_1 = arith.constant 0 : i32
    return %c0_i32, %c0_i32_0 : i32, i32
  }
  func.func @transform_1(%arg0: i32) -> (i32, i32) {
    %c0_i32 = arith.constant 0 : i32
    %c0_i32_0 = arith.constant 0 : i32
    %c0_i32_1 = arith.constant 0 : i32
    return %c0_i32, %c0_i32_0 : i32, i32
  }
  func.func @transform_2(%arg0: i32) -> (i32, i32, i32) {
    %c0_i32 = arith.constant 0 : i32
    %c0_i32_0 = arith.constant 0 : i32
    %c0_i32_1 = arith.constant 0 : i32
    %c0_i32_2 = arith.constant 0 : i32
    return %c0_i32, %c0_i32_0, %c0_i32_1 : i32, i32, i32
  }
  func.func @transform_3(%arg0: i32) -> (i32, i32) {
    %c0_i32 = arith.constant 0 : i32
    %c0_i32_0 = arith.constant 0 : i32
    %c0_i32_1 = arith.constant 0 : i32
    return %c0_i32, %c0_i32_0 : i32, i32
  }
  func.func @transform_4(%arg0: i32) -> (i32, i32) {
    %c0_i32 = arith.constant 0 : i32
    %c0_i32_0 = arith.constant 0 : i32
    %c0_i32_1 = arith.constant 0 : i32
    return %c0_i32, %c0_i32_0 : i32, i32
  }
  func.func @transform_5(%arg0: i32) -> (i32, i32) {
    %c0_i32 = arith.constant 0 : i32
    %c0_i32_0 = arith.constant 0 : i32
    %c0_i32_1 = arith.constant 0 : i32
    return %c0_i32, %c0_i32_0 : i32, i32
  }
  func.func @transform_6(%arg0: i32) -> (i32, i32) {
    %c0_i32 = arith.constant 0 : i32
    %c0_i32_0 = arith.constant 0 : i32
    %c0_i32_1 = arith.constant 0 : i32
    return %c0_i32, %c0_i32_0 : i32, i32
  }
}

</mosaic_0001>

<llo_original>
// kernel: pose_forward.1
$region0: #{pose_forward.1}
  #allocation0 [shape = 'u32[]', space=smem, size = 0x4, offset = 0x4, fixed_abs, tag = 'smem constant byte address 0x4 - core index']
  #allocation1 [shape = 'u32[144,128]{1,0:T(1,128)}', space=vmem, size = 0x12000, scoped, tag = 'internal scratch']
  %s0 = inlined_call_operand.vmem [shape: f32[10,80], index: 0, kind: input, shape index: {}]
  %s1 = inlined_call_operand.vmem [shape: f32[80,20], index: 1, kind: input, shape index: {}]
  %s2 = inlined_call_operand.vmem [shape: f32[2,20,20], index: 2, kind: input, shape index: {}]
  %s3 = inlined_call_operand.vmem [shape: f32[20,40], index: 3, kind: input, shape index: {}]
  %s4 = inlined_call_operand.vmem [shape: f32[40,65], index: 4, kind: input, shape index: {}]
  %s5 = inlined_call_operand.vmem [shape: f32[5,65], index: 5, kind: input, shape index: {}]
  %s6 = inlined_call_operand.vmem [shape: f32[10,65], index: 6, kind: output, shape index: {}]
  %s7 = sld [smem:[#allocation0]]
  $region34: #{pose_forward.1} parent=0
    _
  %s9 = ssub.s32 1, %s7
  %s10 = scalar_select 0, %s9, %s7
  // Predicated region
  $region2: #{pose_forward.1} parent=0 // pred_check
    _
  $region3: #{pose_forward.1} parent=0 // pred_check_branch
    %12 = sbr.rel (0) target = $region5
  $region4: #{pose_forward.1} parent=0 // pred_region
    _
  $region5: #{pose_forward.1} parent=0 // pred_fallthru
    _
  // Predicated region
  $region6: #{pose_forward.1} parent=0 // pred_check
    _
  $region7: #{pose_forward.1} parent=0 // pred_check_branch
    %14 = sbr.rel (0) target = $region9
  $region8: #{pose_forward.1} parent=0 // pred_region
    _
  $region9: #{pose_forward.1} parent=0 // pred_fallthru
    _
  // Predicated region
  $region10: #{pose_forward.1} parent=0 // pred_check
    _
  $region11: #{pose_forward.1} parent=0 // pred_check_branch
    %16 = sbr.rel (0) target = $region13
  $region12: #{pose_forward.1} parent=0 // pred_region
    _
  $region13: #{pose_forward.1} parent=0 // pred_fallthru
    _
  // Predicated region
  $region14: #{pose_forward.1} parent=0 // pred_check
    _
  $region15: #{pose_forward.1} parent=0 // pred_check_branch
    %18 = sbr.rel (0) target = $region17
  $region16: #{pose_forward.1} parent=0 // pred_region
    _
  $region17: #{pose_forward.1} parent=0 // pred_fallthru
    _
  // Predicated region
  $region18: #{pose_forward.1} parent=0 // pred_check
    _
  $region19: #{pose_forward.1} parent=0 // pred_check_branch
    %20 = sbr.rel (0) target = $region21
  $region20: #{pose_forward.1} parent=0 // pred_region
    _
  $region21: #{pose_forward.1} parent=0 // pred_fallthru
    _
  // Predicated region
  $region22: #{pose_forward.1} parent=0 // pred_check
    _
  $region23: #{pose_forward.1} parent=0 // pred_check_branch
    %22 = sbr.rel (0) target = $region25
  $region24: #{pose_forward.1} parent=0 // pred_region
    _
  $region25: #{pose_forward.1} parent=0 // pred_fallthru
    _
  %v23 = vld [vmem:[%s0] sm:$0xff]
  %v24 = vld [vmem:[%s0 + $0x8] sm:$0x3]
  %v25 = vld [vmem:[%s1] sm:$0xff]
  %v26 = vld [vmem:[%s1 + $0x8] sm:$0xff]
  %v27 = vld [vmem:[%s1 + $0x10] sm:$0xff]
  %v28 = vld [vmem:[%s1 + $0x18] sm:$0xff]
  %v29 = vld [vmem:[%s1 + $0x20] sm:$0xff]
  %v30 = vld [vmem:[%s1 + $0x28] sm:$0xff]
  %v31 = vld [vmem:[%s1 + $0x30] sm:$0xff]
  %v32 = vld [vmem:[%s1 + $0x38] sm:$0xff]
  %v33 = vld [vmem:[%s1 + $0x40] sm:$0xff]
  %v34 = vld [vmem:[%s1 + $0x48] sm:$0xff]
  %v35 = vld [vmem:[%s5] sm:$0x1]
  %v36 = vlaneseq
  %v37 = vshrl.u32 %v36, 7
  %v38 = vsub.s32 0, %v37
  %v39 = vrot.slane %v35, %v38
  %vm40 = vcmask 654336
  %v42 = vsel %vm40, %v23, 0
  %v45 = vsel %vm40, %v24, 0
  %47 = vmatprep.subr.mxu0 0.0
  %48 = vmatpush1.msra.mxu0 %v25
  %49 = vmatprep.subr.mxu0 0.0
  %50 = vmatpush1.msra.mxu0 %v26
  %51 = vmatprep.subr.mxu0 0.0
  %52 = vmatpush1.msra.mxu0 %v27
  %53 = vmatprep.subr.mxu0 0.0
  %54 = vmatpush1.msra.mxu0 %v28
  %55 = vmatprep.subr.mxu0 0.0
  %56 = vmatpush1.msra.mxu0 %v29
  %57 = vmatprep.subr.mxu0 0.0
  %58 = vmatpush1.msra.mxu0 %v30
  %59 = vmatprep.subr.mxu0 0.0
  %60 = vmatpush1.msra.mxu0 %v31
  %61 = vmatprep.subr.mxu0 0.0
  %62 = vmatpush1.msra.mxu0 %v32
  %63 = vmatprep.subr.mxu0 0.0
  %64 = vmatpush1.msra.mxu0 %v33
  %65 = vmatprep.subr.mxu0 0.0
  %66 = vmatpush1.msra.mxu0 %v34
  %67 = vmatprep.subr.mxu0 0.0
  %68 = vmatpush1.msra.mxu0 0.0
  %69 = vmatprep.subr.mxu0 0.0
  %70 = vmatpush1.msra.mxu0 0.0
  %71 = vmatprep.subr.mxu0 0.0
  %72 = vmatpush1.msra.mxu0 0.0
  %73 = vmatprep.subr.mxu0 0.0
  %74 = vmatpush1.msra.mxu0 0.0
  %75 = vmatprep.subr.mxu0 0.0
  %76 = vmatpush1.msra.mxu0 0.0
  %77 = vmatprep.subr.mxu0 0.0
  %78 = vmatpush1.msra.mxu0 0.0
  %79 = vmatprep.subr.mxu0 0.0
  %80 = vmatpush1.msra.mxu0 0.0
  %81 = vmatprep.subr.mxu0 0.0
  %82 = vmatpush1.msra.mxu0 0.0
  %83 = vmatprep.subr.mxu0 0.0
  %84 = vmatpush1.msra.mxu0 0.0
  %85 = vmatprep.subr.mxu0 0.0
  %86 = vmatpush1.msra.mxu0 0.0
  %87 = vmatprep.subr.mxu0 0.0
  %88 = vmatpush1.msra.mxu0 0.0
  %89 = vmatprep.subr.mxu0 0.0
  %90 = vmatpush1.msra.mxu0 0.0
  %91 = vmatprep.subr.mxu0 0.0
  %92 = vmatpush1.msra.mxu0 0.0
  %93 = vmatprep.subr.mxu0 0.0
  %94 = vmatpush1.msra.mxu0 0.0
  %95 = vmatprep.subr.mxu0 0.0
  %96 = vmatpush1.msra.mxu0 0.0
  %97 = vmatprep.subr.mxu0 0.0
  %98 = vmatpush1.msra.mxu0 0.0
  %99 = vmatprep.subr.mxu0 0.0
  %100 = vmatpush1.msra.mxu0 0.0
  %101 = vmatprep.subr.mxu0 0.0
  %102 = vmatpush1.msra.mxu0 0.0
  %103 = vmatprep.subr.mxu0 0.0
  %104 = vmatpush1.msra.mxu0 0.0
  %105 = vmatprep.subr.mxu0 0.0
  %106 = vmatpush1.msra.mxu0 0.0
  %107 = vmatprep.subr.mxu0 0.0
  %108 = vmatpush1.msra.mxu0 0.0
  %109 = vmatprep.subr.mxu0 0.0
  %110 = vmatpush1.msra.mxu0 0.0
  %111 = vmatprep.mubr.f32.mxu0 0.0
  %112 = vmatmul.mubr.f32.gmra.mrb[0].mxu0 %v42
  %v113 = vpop.f32.mrb[0].mxu0
  %v114 = vadd.f32 %v39, %v113
  %v115 = vpop.f32.mrb[0].mxu0
  %116 = vmatprep.mubr.f32.mxu0 0.0
  %117 = vmatmul.mubr.f32.gmra.mrb[0].mxu0 %v45
  %v118 = vpop.f32.mrb[0].mxu0
  %v119 = vadd.f32 %v39, %v118
  %v120 = vpop.f32.mrb[0].mxu0
  %121 = vdwg.mxu0
  %v122 = vmax.f32 %v114, 0.0
  %v123 = vmax.f32 %v119, 0.0
  %v124 = vld [vmem:[%s2] sm:$0xff]
  %v125 = vld [vmem:[%s2 + $0x8] sm:$0xff]
  %v126 = vld [vmem:[%s2 + $0x10] sm:$0xf]
  %v127 = vld [vmem:[%s5 + $0x1] sm:$0x1]
  %v128 = vlaneseq
  %v129 = vshrl.u32 %v128, 7
  %v130 = vsub.s32 0, %v129
  %v131 = vrot.slane %v127, %v130
  %vm132 = vcmask 162816
  %v134 = vsel %vm132, %v122, 0
  %v137 = vsel %vm132, %v123, 0
  %vm139 = vcmask 1043456
  %v141 = vsel %vm139, %v126, 0
  %143 = vmatprep.subr.mxu0 0.0
  %144 = vmatpush1.msra.mxu0 %v124
  %145 = vmatprep.subr.mxu0 0.0
  %146 = vmatpush1.msra.mxu0 %v125
  %147 = vmatprep.subr.mxu0 0.0
  %148 = vmatpush1.msra.mxu0 %v141
  %149 = vmatprep.subr.mxu0 0.0
  %150 = vmatpush1.msra.mxu0 0.0
  %151 = vmatprep.subr.mxu0 0.0
  %152 = vmatpush1.msra.mxu0 0.0
  %153 = vmatprep.subr.mxu0 0.0
  %154 = vmatpush1.msra.mxu0 0.0
  %155 = vmatprep.subr.mxu0 0.0
  %156 = vmatpush1.msra.mxu0 0.0
  %157 = vmatprep.subr.mxu0 0.0
  %158 = vmatpush1.msra.mxu0 0.0
  %159 = vmatprep.subr.mxu0 0.0
  %160 = vmatpush1.msra.mxu0 0.0
  %161 = vmatprep.subr.mxu0 0.0
  %162 = vmatpush1.msra.mxu0 0.0
  %163 = vmatprep.subr.mxu0 0.0
  %164 = vmatpush1.msra.mxu0 0.0
  %165 = vmatprep.subr.mxu0 0.0
  %166 = vmatpush1.msra.mxu0 0.0
  %167 = vmatprep.subr.mxu0 0.0
  %168 = vmatpush1.msra.mxu0 0.0
  %169 = vmatprep.subr.mxu0 0.0
  %170 = vmatpush1.msra.mxu0 0.0
  %171 = vmatprep.subr.mxu0 0.0
  %172 = vmatpush1.msra.mxu0 0.0
  %173 = vmatprep.subr.mxu0 0.0
  %174 = vmatpush1.msra.mxu0 0.0
  %175 = vmatprep.subr.mxu0 0.0
  %176 = vmatpush1.msra.mxu0 0.0
  %177 = vmatprep.subr.mxu0 0.0
  %178 = vmatpush1.msra.mxu0 0.0
  %179 = vmatprep.subr.mxu0 0.0
  %180 = vmatpush1.msra.mxu0 0.0
  %181 = vmatprep.subr.mxu0 0.0
  %182 = vmatpush1.msra.mxu0 0.0
  %183 = vmatprep.subr.mxu0 0.0
  %184 = vmatpush1.msra.mxu0 0.0
  %185 = vmatprep.subr.mxu0 0.0
  %186 = vmatpush1.msra.mxu0 0.0
  %187 = vmatprep.subr.mxu0 0.0
  %188 = vmatpush1.msra.mxu0 0.0
  %189 = vmatprep.subr.mxu0 0.0
  %190 = vmatpush1.msra.mxu0 0.0
  %191 = vmatprep.subr.mxu0 0.0
  %192 = vmatpush1.msra.mxu0 0.0
  %193 = vmatprep.subr.mxu0 0.0
  %194 = vmatpush1.msra.mxu0 0.0
  %195 = vmatprep.subr.mxu0 0.0
  %196 = vmatpush1.msra.mxu0 0.0
  %197 = vmatprep.subr.mxu0 0.0
  %198 = vmatpush1.msra.mxu0 0.0
  %199 = vmatprep.subr.mxu0 0.0
  %200 = vmatpush1.msra.mxu0 0.0
  %201 = vmatprep.subr.mxu0 0.0
  %202 = vmatpush1.msra.mxu0 0.0
  %203 = vmatprep.subr.mxu0 0.0
  %204 = vmatpush1.msra.mxu0 0.0
  %205 = vmatprep.subr.mxu0 0.0
  %206 = vmatpush1.msra.mxu0 0.0
  %207 = vmatprep.mubr.f32.mxu0 0.0
  %208 = vmatmul.mubr.f32.gmra.mrb[0].mxu0 %v134
  %v209 = vpop.f32.mrb[0].mxu0
  %v210 = vadd.f32 %v131, %v209
  %v211 = vpop.f32.mrb[0].mxu0
  %212 = vmatprep.mubr.f32.mxu0 0.0
  %213 = vmatmul.mubr.f32.gmra.mrb[0].mxu0 %v137
  %v214 = vpop.f32.mrb[0].mxu0
  %v215 = vadd.f32 %v131, %v214
  %v216 = vpop.f32.mrb[0].mxu0
  %217 = vdwg.mxu0
  %v218 = vmax.f32 %v210, 0.0
  %v219 = vmax.f32 %v215, 0.0
  %s220 = scalar_lea.vmem %s2, 24
  %v221 = vld [vmem:[%s220] sm:$0xff]
  %v222 = vld [vmem:[%s220 + $0x8] sm:$0xff]
  %v223 = vld [vmem:[%s220 + $0x10] sm:$0xf]
  %v224 = vld [vmem:[%s5 + $0x2] sm:$0x1]
  %v225 = vlaneseq
  %v226 = vshrl.u32 %v225, 7
  %v227 = vsub.s32 0, %v226
  %v228 = vrot.slane %v224, %v227
  %v230 = vsel %vm132, %v218, 0
  %v233 = vsel %vm132, %v219, 0
  %v236 = vsel %vm139, %v223, 0
  %238 = vmatprep.subr.mxu0 0.0
  %239 = vmatpush1.msra.mxu0 %v221
  %240 = vmatprep.subr.mxu0 0.0
  %241 = vmatpush1.msra.mxu0 %v222
  %242 = vmatprep.subr.mxu0 0.0
  %243 = vmatpush1.msra.mxu0 %v236
  %244 = vmatprep.subr.mxu0 0.0
  %245 = vmatpush1.msra.mxu0 0.0
  %246 = vmatprep.subr.mxu0 0.0
  %247 = vmatpush1.msra.mxu0 0.0
  %248 = vmatprep.subr.mxu0 0.0
  %249 = vmatpush1.msra.mxu0 0.0
  %250 = vmatprep.subr.mxu0 0.0
  %251 = vmatpush1.msra.mxu0 0.0
  %252 = vmatprep.subr.mxu0 0.0
  %253 = vmatpush1.msra.mxu0 0.0
  %254 = vmatprep.subr.mxu0 0.0
  %255 = vmatpush1.msra.mxu0 0.0
  %256 = vmatprep.subr.mxu0 0.0
  %257 = vmatpush1.msra.mxu0 0.0
  %258 = vmatprep.subr.mxu0 0.0
  %259 = vmatpush1.msra.mxu0 0.0
  %260 = vmatprep.subr.mxu0 0.0
  %261 = vmatpush1.msra.mxu0 0.0
  %262 = vmatprep.subr.mxu0 0.0
  %263 = vmatpush1.msra.mxu0 0.0
  %264 = vmatprep.subr.mxu0 0.0
  %265 = vmatpush1.msra.mxu0 0.0
  %266 = vmatprep.subr.mxu0 0.0
  %267 = vmatpush1.msra.mxu0 0.0
  %268 = vmatprep.subr.mxu0 0.0
  %269 = vmatpush1.msra.mxu0 0.0
  %270 = vmatprep.subr.mxu0 0.0
  %271 = vmatpush1.msra.mxu0 0.0
  %272 = vmatprep.subr.mxu0 0.0
  %273 = vmatpush1.msra.mxu0 0.0
  %274 = vmatprep.subr.mxu0 0.0
  %275 = vmatpush1.msra.mxu0 0.0
  %276 = vmatprep.subr.mxu0 0.0
  %277 = vmatpush1.msra.mxu0 0.0
  %278 = vmatprep.subr.mxu0 0.0
  %279 = vmatpush1.msra.mxu0 0.0
  %280 = vmatprep.subr.mxu0 0.0
  %281 = vmatpush1.msra.mxu0 0.0
  %282 = vmatprep.subr.mxu0 0.0
  %283 = vmatpush1.msra.mxu0 0.0
  %284 = vmatprep.subr.mxu0 0.0
  %285 = vmatpush1.msra.mxu0 0.0
  %286 = vmatprep.subr.mxu0 0.0
  %287 = vmatpush1.msra.mxu0 0.0
  %288 = vmatprep.subr.mxu0 0.0
  %289 = vmatpush1.msra.mxu0 0.0
  %290 = vmatprep.subr.mxu0 0.0
  %291 = vmatpush1.msra.mxu0 0.0
  %292 = vmatprep.subr.mxu0 0.0
  %293 = vmatpush1.msra.mxu0 0.0
  %294 = vmatprep.subr.mxu0 0.0
  %295 = vmatpush1.msra.mxu0 0.0
  %296 = vmatprep.subr.mxu0 0.0
  %297 = vmatpush1.msra.mxu0 0.0
  %298 = vmatprep.subr.mxu0 0.0
  %299 = vmatpush1.msra.mxu0 0.0
  %300 = vmatprep.subr.mxu0 0.0
  %301 = vmatpush1.msra.mxu0 0.0
  %302 = vmatprep.mubr.f32.mxu0 0.0
  %303 = vmatmul.mubr.f32.gmra.mrb[0].mxu0 %v230
  %v304 = vpop.f32.mrb[0].mxu0
  %v305 = vadd.f32 %v228, %v304
  %v306 = vpop.f32.mrb[0].mxu0
  %307 = vmatprep.mubr.f32.mxu0 0.0
  %308 = vmatmul.mubr.f32.gmra.mrb[0].mxu0 %v233
  %v309 = vpop.f32.mrb[0].mxu0
  %v310 = vadd.f32 %v228, %v309
  %v311 = vpop.f32.mrb[0].mxu0
  %312 = vdwg.mxu0
  %v313 = vmax.f32 %v305, 0.0
  %v314 = vmax.f32 %v310, 0.0
  %v315 = vadd.f32 %v122, %v313
  %v316 = vadd.f32 %v123, %v314
  %v317 = vld [vmem:[%s3] sm:$0xff]
  %v318 = vld [vmem:[%s3 + $0x8] sm:$0xff]
  %v319 = vld [vmem:[%s3 + $0x10] sm:$0xf]
  %v320 = vld [vmem:[%s5 + $0x3] sm:$0x1]
  %v321 = vlaneseq
  %v322 = vshrl.u32 %v321, 7
  %v323 = vsub.s32 0, %v322
  %v324 = vrot.slane %v320, %v323
  %v326 = vsel %vm132, %v315, 0
  %v329 = vsel %vm132, %v316, 0
  %v332 = vsel %vm139, %v319, 0
  %334 = vmatprep.subr.mxu0 0.0
  %335 = vmatpush1.msra.mxu0 %v317
  %336 = vmatprep.subr.mxu0 0.0
  %337 = vmatpush1.msra.mxu0 %v318
  %338 = vmatprep.subr.mxu0 0.0
  %339 = vmatpush1.msra.mxu0 %v332
  %340 = vmatprep.subr.mxu0 0.0
  %341 = vmatpush1.msra.mxu0 0.0
  %342 = vmatprep.subr.mxu0 0.0
  %343 = vmatpush1.msra.mxu0 0.0
  %344 = vmatprep.subr.mxu0 0.0
  %345 = vmatpush1.msra.mxu0 0.0
  %346 = vmatprep.subr.mxu0 0.0
  %347 = vmatpush1.msra.mxu0 0.0
  %348 = vmatprep.subr.mxu0 0.0
  %349 = vmatpush1.msra.mxu0 0.0
  %350 = vmatprep.subr.mxu0 0.0
  %351 = vmatpush1.msra.mxu0 0.0
  %352 = vmatprep.subr.mxu0 0.0
  %353 = vmatpush1.msra.mxu0 0.0
  %354 = vmatprep.subr.mxu0 0.0
  %355 = vmatpush1.msra.mxu0 0.0
  %356 = vmatprep.subr.mxu0 0.0
  %357 = vmatpush1.msra.mxu0 0.0
  %358 = vmatprep.subr.mxu0 0.0
  %359 = vmatpush1.msra.mxu0 0.0
  %360 = vmatprep.subr.mxu0 0.0
  %361 = vmatpush1.msra.mxu0 0.0
  %362 = vmatprep.subr.mxu0 0.0
  %363 = vmatpush1.msra.mxu0 0.0
  %364 = vmatprep.subr.mxu0 0.0
  %365 = vmatpush1.msra.mxu0 0.0
  %366 = vmatprep.subr.mxu0 0.0
  %367 = vmatpush1.msra.mxu0 0.0
  %368 = vmatprep.subr.mxu0 0.0
  %369 = vmatpush1.msra.mxu0 0.0
  %370 = vmatprep.subr.mxu0 0.0
  %371 = vmatpush1.msra.mxu0 0.0
  %372 = vmatprep.subr.mxu0 0.0
  %373 = vmatpush1.msra.mxu0 0.0
  %374 = vmatprep.subr.mxu0 0.0
  %375 = vmatpush1.msra.mxu0 0.0
  %376 = vmatprep.subr.mxu0 0.0
  %377 = vmatpush1.msra.mxu0 0.0
  %378 = vmatprep.subr.mxu0 0.0
  %379 = vmatpush1.msra.mxu0 0.0
  %380 = vmatprep.subr.mxu0 0.0
  %381 = vmatpush1.msra.mxu0 0.0
  %382 = vmatprep.subr.mxu0 0.0
  %383 = vmatpush1.msra.mxu0 0.0
  %384 = vmatprep.subr.mxu0 0.0
  %385 = vmatpush1.msra.mxu0 0.0
  %386 = vmatprep.subr.mxu0 0.0
  %387 = vmatpush1.msra.mxu0 0.0
  %388 = vmatprep.subr.mxu0 0.0
  %389 = vmatpush1.msra.mxu0 0.0
  %390 = vmatprep.subr.mxu0 0.0
  %391 = vmatpush1.msra.mxu0 0.0
  %392 = vmatprep.subr.mxu0 0.0
  %393 = vmatpush1.msra.mxu0 0.0
  %394 = vmatprep.subr.mxu0 0.0
  %395 = vmatpush1.msra.mxu0 0.0
  %396 = vmatprep.subr.mxu0 0.0
  %397 = vmatpush1.msra.mxu0 0.0
  %398 = vmatprep.mubr.f32.mxu0 0.0
  %399 = vmatmul.mubr.f32.gmra.mrb[0].mxu0 %v326
  %v400 = vpop.f32.mrb[0].mxu0
  %v401 = vadd.f32 %v324, %v400
  %v402 = vpop.f32.mrb[0].mxu0
  %403 = vmatprep.mubr.f32.mxu0 0.0
  %404 = vmatmul.mubr.f32.gmra.mrb[0].mxu0 %v329
  %v405 = vpop.f32.mrb[0].mxu0
  %v406 = vadd.f32 %v324, %v405
  %v407 = vpop.f32.mrb[0].mxu0
  %408 = vdwg.mxu0
  %v409 = vmax.f32 %v401, 0.0
  %v410 = vmax.f32 %v406, 0.0
  %v411 = vld [vmem:[%s4] sm:$0xff]
  %v412 = vld [vmem:[%s4 + $0x8] sm:$0xff]
  %v413 = vld [vmem:[%s4 + $0x10] sm:$0xff]
  %v414 = vld [vmem:[%s4 + $0x18] sm:$0xff]
  %v415 = vld [vmem:[%s4 + $0x20] sm:$0xff]
  %v416 = vld [vmem:[%s5 + $0x4] sm:$0x1]
  %v417 = vlaneseq
  %v418 = vshrl.u32 %v417, 7
  %v419 = vsub.s32 0, %v418
  %v420 = vrot.slane %v416, %v419
  %vm421 = vcmask 326656
  %v423 = vsel %vm421, %v409, 0
  %v426 = vsel %vm421, %v410, 0
  %428 = vmatprep.subr.mxu0 0.0
  %429 = vmatpush1.msra.mxu0 %v411
  %430 = vmatprep.subr.mxu0 0.0
  %431 = vmatpush1.msra.mxu0 %v412
  %432 = vmatprep.subr.mxu0 0.0
  %433 = vmatpush1.msra.mxu0 %v413
  %434 = vmatprep.subr.mxu0 0.0
  %435 = vmatpush1.msra.mxu0 %v414
  %436 = vmatprep.subr.mxu0 0.0
  %437 = vmatpush1.msra.mxu0 %v415
  %438 = vmatprep.subr.mxu0 0.0
  %439 = vmatpush1.msra.mxu0 0.0
  %440 = vmatprep.subr.mxu0 0.0
  %441 = vmatpush1.msra.mxu0 0.0
  %442 = vmatprep.subr.mxu0 0.0
  %443 = vmatpush1.msra.mxu0 0.0
  %444 = vmatprep.subr.mxu0 0.0
  %445 = vmatpush1.msra.mxu0 0.0
  %446 = vmatprep.subr.mxu0 0.0
  %447 = vmatpush1.msra.mxu0 0.0
  %448 = vmatprep.subr.mxu0 0.0
  %449 = vmatpush1.msra.mxu0 0.0
  %450 = vmatprep.subr.mxu0 0.0
  %451 = vmatpush1.msra.mxu0 0.0
  %452 = vmatprep.subr.mxu0 0.0
  %453 = vmatpush1.msra.mxu0 0.0
  %454 = vmatprep.subr.mxu0 0.0
  %455 = vmatpush1.msra.mxu0 0.0
  %456 = vmatprep.subr.mxu0 0.0
  %457 = vmatpush1.msra.mxu0 0.0
  %458 = vmatprep.subr.mxu0 0.0
  %459 = vmatpush1.msra.mxu0 0.0
  %460 = vmatprep.subr.mxu0 0.0
  %461 = vmatpush1.msra.mxu0 0.0
  %462 = vmatprep.subr.mxu0 0.0
  %463 = vmatpush1.msra.mxu0 0.0
  %464 = vmatprep.subr.mxu0 0.0
  %465 = vmatpush1.msra.mxu0 0.0
  %466 = vmatprep.subr.mxu0 0.0
  %467 = vmatpush1.msra.mxu0 0.0
  %468 = vmatprep.subr.mxu0 0.0
  %469 = vmatpush1.msra.mxu0 0.0
  %470 = vmatprep.subr.mxu0 0.0
  %471 = vmatpush1.msra.mxu0 0.0
  %472 = vmatprep.subr.mxu0 0.0
  %473 = vmatpush1.msra.mxu0 0.0
  %474 = vmatprep.subr.mxu0 0.0
  %475 = vmatpush1.msra.mxu0 0.0
  %476 = vmatprep.subr.mxu0 0.0
  %477 = vmatpush1.msra.mxu0 0.0
  %478 = vmatprep.subr.mxu0 0.0
  %479 = vmatpush1.msra.mxu0 0.0
  %480 = vmatprep.subr.mxu0 0.0
  %481 = vmatpush1.msra.mxu0 0.0
  %482 = vmatprep.subr.mxu0 0.0
  %483 = vmatpush1.msra.mxu0 0.0
  %484 = vmatprep.subr.mxu0 0.0
  %485 = vmatpush1.msra.mxu0 0.0
  %486 = vmatprep.subr.mxu0 0.0
  %487 = vmatpush1.msra.mxu0 0.0
  %488 = vmatprep.subr.mxu0 0.0
  %489 = vmatpush1.msra.mxu0 0.0
  %490 = vmatprep.subr.mxu0 0.0
  %491 = vmatpush1.msra.mxu0 0.0
  %492 = vmatprep.mubr.f32.mxu0 0.0
  %493 = vmatmul.mubr.f32.gmra.mrb[0].mxu0 %v423
  %v494 = vpop.f32.mrb[0].mxu0
  %v495 = vadd.f32 %v420, %v494
  %v496 = vpop.f32.mrb[0].mxu0
  %497 = vmatprep.mubr.f32.mxu0 0.0
  %498 = vmatmul.mubr.f32.gmra.mrb[0].mxu0 %v426
  %v499 = vpop.f32.mrb[0].mxu0
  %v500 = vadd.f32 %v420, %v499
  %v501 = vpop.f32.mrb[0].mxu0
  %502 = vdwg.mxu0
  %vm503 = vcmask 531456
  %504 = vst.msk [vmem:[%s6] sm:$0xff] %vm503, %v495
  %vm505 = vcmask 525312
  %506 = vst.msk [vmem:[%s6 + $0x8] sm:$0x3] %vm505, %v500
  // Predicated region
  $region26: #{pose_forward.1} parent=0 // pred_check
    _
  $region27: #{pose_forward.1} parent=0 // pred_check_branch
    %508 = sbr.rel (0) target = $region29
  $region28: #{pose_forward.1} parent=0 // pred_region
    _
  $region29: #{pose_forward.1} parent=0 // pred_fallthru
    _
  // Predicated region
  $region30: #{pose_forward.1} parent=0 // pred_check
    _
  $region31: #{pose_forward.1} parent=0 // pred_check_branch
    %510 = sbr.rel (0) target = $region33
  $region32: #{pose_forward.1} parent=0 // pred_region
    _
  $region33: #{pose_forward.1} parent=0 // pred_fallthru
    _

</llo_original>
